<compile_context>
chip_gen: v7x
topology: tpu7x:2x2x1
jax: 0.10.0
libtpu: 0.0.40
codegen_flags: <defaults>
</compile_context>

<pallas_src>
import jax
import jax.numpy as jnp
from jax.experimental import pallas as pl
from jax.experimental.pallas import tpu as pltpu


def reward_kernel(x_ref, w1_ref, b1_ref, w2_ref, b2_ref, w3_ref, b3_ref, o_ref):
    # fc1 + ReLU  (bf16 operands on the MXU, f32 accumulate)
    x = x_ref[...].astype(jnp.bfloat16)
    h1 = jnp.dot(x, w1_ref[...], preferred_element_type=jnp.float32)
    h1 = jnp.maximum(h1 + b1_ref[...], 0.0)
    # fc2 + ReLU
    h2 = jnp.dot(h1.astype(jnp.bfloat16), w2_ref[...],
                 preferred_element_type=jnp.float32)
    h2 = jnp.maximum(h2 + b2_ref[...], 0.0)
    # fc3: single output column -> VPU multiply + lane reduction (skip the MXU)
    o = jnp.sum(h2 * w3_ref[...], axis=-1) + b3_ref[0, 0]      # (tb,) f32
    # Column store: same orientation as the reduction result, no relayout.
    o_ref[...] = o[:, None].astype(o_ref.dtype)


def _choose_geometry(B, max_tile=2048):
    """Return (padded_batch, batch_tile).

    * Batch is rounded up only to a multiple of 8 (sublane granularity).
    * The tile is the largest multiple-of-8 divisor of the padded batch that
      is <= max_tile and still leaves >= 2 grid steps (so v7x can use both
      TensorCores); tiny batches fall back to a single step.
    * Awkward batch sizes (e.g. 8*prime) that would force tiny tiles are
      instead padded a little further, keeping the grid length even.
    """
    Bp = -(-B // 8) * 8
    divs = [t for t in range(8, min(Bp, max_tile) + 1, 8) if Bp % t == 0]
    multi = [t for t in divs if Bp // t >= 2]
    tb = max(multi) if multi else (max(divs) if divs else Bp)
    if Bp >= 512 and tb < 128:
        tb = 256
        Bp = -(-Bp // (2 * tb)) * (2 * tb)   # multiple of 2*tb -> even grid
    return Bp, tb


def reward_forward(x, params, max_tile=2048):
    """x: (B, num_inputs) f32.  params: transposed weights / 2D biases (f32)."""
    B, D = x.shape
    H = params["w1"].shape[1]

    Bp, tb = _choose_geometry(B, max_tile)
    nb = Bp // tb
    if Bp != B:
        x = jnp.pad(x, ((0, Bp - B), (0, 0)))

    # MXU operands in bf16, everything else f32.
    w1 = params["w1"].astype(jnp.bfloat16)               # (D, H)
    w2 = params["w2"].astype(jnp.bfloat16)               # (H, H)
    w3 = params["w3"].reshape(1, H).astype(jnp.float32)  # (1, H) row for VPU reduce
    b1 = params["b1"].reshape(1, H).astype(jnp.float32)  # (1, H)
    b2 = params["b2"].reshape(1, H).astype(jnp.float32)  # (1, H)
    b3 = params["b3"].reshape(1, 1).astype(jnp.float32)  # (1, 1) scalar -> SMEM

    resident = lambda a: pl.BlockSpec(a.shape, lambda i: (0, 0))

    weight_bytes = ((w1.size + w2.size) * 2
                    + (w3.size + b1.size + b2.size + b3.size) * 4)
    cost = pl.CostEstimate(
        flops=2 * Bp * (D * H + H * H + H),
        transcendentals=0,
        bytes_accessed=Bp * (4 * D + 4) + weight_bytes,
    )

    out = pl.pallas_call(
        reward_kernel,
        out_shape=jax.ShapeDtypeStruct((Bp, 1), jnp.float32),
        grid=(nb,),
        in_specs=[
            pl.BlockSpec((tb, D), lambda i: (i, 0)),                # x: batch-tiled
            resident(w1), resident(b1),
            resident(w2), resident(b2),
            resident(w3),
            pl.BlockSpec(memory_space=pltpu.MemorySpace.SMEM),      # b3 scalar
        ],
        out_specs=pl.BlockSpec((tb, 1), lambda i: (i, 0)),          # column output
        compiler_params=pltpu.CompilerParams(
            dimension_semantics=("parallel",),
        ),
        cost_estimate=cost,
    )(x, w1, b1, w2, b2, w3, b3)

    return out[:B]


def init_params(key, num_inputs, hidden_size):
    """Deterministic synthetic parameters (PyTorch nn.Linear, transposed layout)."""
    ks = jax.random.split(key, 6)
    w1 = jax.random.normal(ks[0], (num_inputs, hidden_size), jnp.float32) * 0.1
    b1 = jax.random.normal(ks[1], (1, hidden_size), jnp.float32) * 0.1
    w2 = jax.random.normal(ks[2], (hidden_size, hidden_size), jnp.float32) * 0.1
    b2 = jax.random.normal(ks[3], (1, hidden_size), jnp.float32) * 0.1
    w3 = jax.random.normal(ks[4], (hidden_size, 1), jnp.float32) * 0.1
    b3 = jax.random.normal(ks[5], (1, 1), jnp.float32) * 0.1
    return {"w1": w1, "b1": b1, "w2": w2, "b2": b2, "w3": w3, "b3": b3}


def reward_reference(x, p):
    h1 = jnp.maximum(x @ p["w1"] + p["b1"], 0.0)
    h2 = jnp.maximum(h1 @ p["w2"] + p["b2"], 0.0)
    return h2 @ p["w3"] + p["b3"]


if __name__ == "__main__":
    # B=384 -> tb=192, grid=(2,): no padding, and both v7x TensorCores get a tile.
    B, num_inputs, hidden_size = 384, 16, 256

    key = jax.random.PRNGKey(0)
    kx, kp = jax.random.split(key)
    x = jax.random.normal(kx, (B, num_inputs), jnp.float32)
    params = init_params(kp, num_inputs, hidden_size)

    out = jax.block_until_ready(reward_forward(x, params))

    ref = reward_reference(x, params)
    assert out.shape == (B, 1)
    # bf16 MXU operands (f32 accumulation) -> loosened tolerance vs f32 reference.
    assert jnp.allclose(out, ref, atol=3e-2, rtol=3e-2), float(
        jnp.max(jnp.abs(out - ref)))

    print("KERNEL_OK")
</pallas_src>

<mosaic_0001>
module attributes {stable_mosaic.version = 11 : i64} {
  func.func @reward_kernel(%arg0: i32, %arg1: memref<192x16xf32, #tpu.memory_space<vmem>>, %arg2: memref<16x256xbf16, #tpu.memory_space<vmem>>, %arg3: memref<1x256xf32, #tpu.memory_space<vmem>>, %arg4: memref<256x256xbf16, #tpu.memory_space<vmem>>, %arg5: memref<1x256xf32, #tpu.memory_space<vmem>>, %arg6: memref<1x256xf32, #tpu.memory_space<vmem>>, %arg7: memref<1x1xf32, #tpu.memory_space<smem>>, %arg8: memref<192x1xf32, #tpu.memory_space<vmem>>) attributes {dimension_semantics = [#tpu.dimension_semantics<parallel>], iteration_bounds = array<i64: 2>, scalar_prefetch = 0 : i64, scratch_operands = 0 : i64, tpu.core_type = #tpu.core_type<tc>, window_params = [{transform_indices = @transform_0, window_bounds = array<i64: 192, 16>}, {pipeline_mode = #tpu.pipeline_mode<synchronous>, transform_indices = @transform_1, window_bounds = array<i64: 16, 256>}, {pipeline_mode = #tpu.pipeline_mode<synchronous>, transform_indices = @transform_2, window_bounds = array<i64: 1, 256>}, {pipeline_mode = #tpu.pipeline_mode<synchronous>, transform_indices = @transform_3, window_bounds = array<i64: 256, 256>}, {pipeline_mode = #tpu.pipeline_mode<synchronous>, transform_indices = @transform_4, window_bounds = array<i64: 1, 256>}, {pipeline_mode = #tpu.pipeline_mode<synchronous>, transform_indices = @transform_5, window_bounds = array<i64: 1, 256>}, {transform_indices = @transform_6, window_bounds = array<i64: 1, 1>}, {transform_indices = @transform_7, window_bounds = array<i64: 192, 1>}]} {
    %c0 = arith.constant 0 : index
    %c0_0 = arith.constant 0 : index
    %0 = vector.load %arg1[%c0, %c0_0] : memref<192x16xf32, #tpu.memory_space<vmem>>, vector<192x16xf32>
    %1 = arith.truncf %0 : vector<192x16xf32> to vector<192x16xbf16>
    %c0_1 = arith.constant 0 : index
    %c0_2 = arith.constant 0 : index
    %2 = vector.load %arg2[%c0_1, %c0_2] : memref<16x256xbf16, #tpu.memory_space<vmem>>, vector<16x256xbf16>
    %cst = arith.constant dense<0.000000e+00> : vector<192x256xf32>
    %3 = tpu.matmul %1, %2, %cst {dimension_numbers = #tpu.dot_dimension_numbers<[1], [0], [0], [1], [0, 0, 1, 1], [], []>} : vector<192x16xbf16>, vector<16x256xbf16>, vector<192x256xf32> -> vector<192x256xf32>
    %c0_3 = arith.constant 0 : index
    %c0_4 = arith.constant 0 : index
    %4 = vector.load %arg3[%c0_3, %c0_4] : memref<1x256xf32, #tpu.memory_space<vmem>>, vector<1x256xf32>
    %5 = vector.broadcast %4 : vector<1x256xf32> to vector<192x256xf32>
    %6 = arith.addf %3, %5 : vector<192x256xf32>
    %cst_5 = arith.constant 0.000000e+00 : f32
    %7 = vector.broadcast %cst_5 : f32 to vector<192x256xf32>
    %8 = arith.maximumf %6, %7 : vector<192x256xf32>
    %9 = arith.truncf %8 : vector<192x256xf32> to vector<192x256xbf16>
    %c0_6 = arith.constant 0 : index
    %c0_7 = arith.constant 0 : index
    %10 = vector.load %arg4[%c0_6, %c0_7] : memref<256x256xbf16, #tpu.memory_space<vmem>>, vector<256x256xbf16>
    %cst_8 = arith.constant dense<0.000000e+00> : vector<192x256xf32>
    %11 = tpu.matmul %9, %10, %cst_8 {dimension_numbers = #tpu.dot_dimension_numbers<[1], [0], [0], [1], [0, 0, 1, 1], [], []>} : vector<192x256xbf16>, vector<256x256xbf16>, vector<192x256xf32> -> vector<192x256xf32>
    %c0_9 = arith.constant 0 : index
    %c0_10 = arith.constant 0 : index
    %12 = vector.load %arg5[%c0_9, %c0_10] : memref<1x256xf32, #tpu.memory_space<vmem>>, vector<1x256xf32>
    %13 = vector.broadcast %12 : vector<1x256xf32> to vector<192x256xf32>
    %14 = arith.addf %11, %13 : vector<192x256xf32>
    %cst_11 = arith.constant 0.000000e+00 : f32
    %15 = vector.broadcast %cst_11 : f32 to vector<192x256xf32>
    %16 = arith.maximumf %14, %15 : vector<192x256xf32>
    %c0_12 = arith.constant 0 : index
    %c0_13 = arith.constant 0 : index
    %17 = vector.load %arg6[%c0_12, %c0_13] : memref<1x256xf32, #tpu.memory_space<vmem>>, vector<1x256xf32>
    %18 = vector.broadcast %17 : vector<1x256xf32> to vector<192x256xf32>
    %19 = arith.mulf %16, %18 : vector<192x256xf32>
    %cst_14 = arith.constant dense<0.000000e+00> : vector<192xf32>
    %20 = vector.multi_reduction <add>, %19, %cst_14 [1] : vector<192x256xf32> to vector<192xf32>
    %c0_15 = arith.constant 0 : index
    %c0_16 = arith.constant 0 : index
    %21 = memref.load %arg7[%c0_15, %c0_16] : memref<1x1xf32, #tpu.memory_space<smem>>
    %22 = vector.broadcast %21 : f32 to vector<192xf32>
    %23 = arith.addf %20, %22 : vector<192xf32>
    %24 = vector.shape_cast %23 : vector<192xf32> to vector<192x1xf32>
    %c0_17 = arith.constant 0 : index
    %c0_18 = arith.constant 0 : index
    %25 = vector.load %arg8[%c0_17, %c0_18] : memref<192x1xf32, #tpu.memory_space<vmem>>, vector<192x1xf32>
    tpu.vector_store %arg8[%c0_17, %c0_18], %24 {strides = array<i32>} : memref<192x1xf32, #tpu.memory_space<vmem>>, vector<192x1xf32>,
    return
  }
  func.func @transform_0(%arg0: i32) -> (i32, i32) {
    %c0_i32 = arith.constant 0 : i32
    %c0_i32_0 = arith.constant 0 : i32
    return %arg0, %c0_i32 : i32, i32
  }
  func.func @transform_1(%arg0: i32) -> (i32, i32) {
    %c0_i32 = arith.constant 0 : i32
    %c0_i32_0 = arith.constant 0 : i32
    %c0_i32_1 = arith.constant 0 : i32
    return %c0_i32, %c0_i32_0 : i32, i32
  }
  func.func @transform_2(%arg0: i32) -> (i32, i32) {
    %c0_i32 = arith.constant 0 : i32
    %c0_i32_0 = arith.constant 0 : i32
    %c0_i32_1 = arith.constant 0 : i32
    return %c0_i32, %c0_i32_0 : i32, i32
  }
  func.func @transform_3(%arg0: i32) -> (i32, i32) {
    %c0_i32 = arith.constant 0 : i32
    %c0_i32_0 = arith.constant 0 : i32
    %c0_i32_1 = arith.constant 0 : i32
    return %c0_i32, %c0_i32_0 : i32, i32
  }
  func.func @transform_4(%arg0: i32) -> (i32, i32) {
    %c0_i32 = arith.constant 0 : i32
    %c0_i32_0 = arith.constant 0 : i32
    %c0_i32_1 = arith.constant 0 : i32
    return %c0_i32, %c0_i32_0 : i32, i32
  }
  func.func @transform_5(%arg0: i32) -> (i32, i32) {
    %c0_i32 = arith.constant 0 : i32
    %c0_i32_0 = arith.constant 0 : i32
    %c0_i32_1 = arith.constant 0 : i32
    return %c0_i32, %c0_i32_0 : i32, i32
  }
  func.func @transform_6(%arg0: i32) -> (i32, i32) {
    %c0_i32 = arith.constant 0 : i32
    %c0_i32_0 = arith.constant 0 : i32
    %c0_i32_1 = arith.constant 0 : i32
    return %c0_i32, %c0_i32_0 : i32, i32
  }
  func.func @transform_7(%arg0: i32) -> (i32, i32) {
    %c0_i32 = arith.constant 0 : i32
    %c0_i32_0 = arith.constant 0 : i32
    return %arg0, %c0_i32 : i32, i32
  }
}

</mosaic_0001>

<llo_original>
// kernel: tpu_custom_call.1
$region0: #{tpu_custom_call.1}
  #allocation0 [shape = 'u32[]', space=smem, size = 0x4, offset = 0x4, fixed_abs, tag = 'smem constant byte address 0x4 - core index']
  #allocation1 [shape = 'u32[144,128]{1,0:T(1,128)}', space=vmem, size = 0x12000, scoped, tag = 'internal scratch']
  #allocation2 [shape = 'f32[1,1]{1,0:T(1,128)S(6)}', space=smem, size = 0x200, scoped, tag = 'scoped memory for tpu_custom_call.1']
  %s0 = inlined_call_operand.vmem [shape: f32[384,16], index: 0, kind: input, shape index: {}]
  %s1 = inlined_call_operand.vmem [shape: bf16[16,256], index: 1, kind: input, shape index: {}]
  %s2 = inlined_call_operand.vmem [shape: f32[1,256], index: 2, kind: input, shape index: {}]
  %s3 = inlined_call_operand.vmem [shape: bf16[256,256], index: 3, kind: input, shape index: {}]
  %s4 = inlined_call_operand.vmem [shape: f32[1,256], index: 4, kind: input, shape index: {}]
  %s5 = inlined_call_operand.vmem [shape: f32[1,256], index: 5, kind: input, shape index: {}]
  %s6 = inlined_call_operand.<no memory space> [shape: f32[1,1], index: 6, kind: input, shape index: {}]
  %s7 = inlined_call_operand.vmem [shape: f32[384,1], index: 7, kind: output, shape index: {}]
  %s8 = sld [smem:[#allocation0]]
  $region61: #{tpu_custom_call.1} parent=0
    _
  %s10 = ssub.s32 1, %s8
  %s11 = scalar_select 0, %s10, %s8
  %12 = sst [smem:[#allocation2]] %s6
  loop: start=0, step=1, limit=4
  $region2: #{tpu_custom_call.1} parent=0 // loop_pre_header
    _
  $region3: #{tpu_custom_call.1} parent=0 // loop_header
    %s14 = sphi 0, %s18
    %p15 = scmp.ge.s32.totalorder %s14, 4
    %s24 = sphi 0, %s26
    %s27 = sphi 0, %s24
    %s28 = sphi 0, %s27
    %s44 = sphi 0, %s28
    %s48 = sphi 0, %s48
    %s50 = sphi 0, %s48
    %s51 = sphi 0, %s50
    %s65 = sphi 0, %s51
    %s69 = sphi 0, %s69
    %s71 = sphi 0, %s69
    %s72 = sphi 0, %s71
    %s86 = sphi 0, %s72
    %s90 = sphi 0, %s90
    %s92 = sphi 0, %s90
    %s93 = sphi 0, %s92
    %s107 = sphi 0, %s93
    %s111 = sphi 0, %s111
    %s113 = sphi 0, %s111
    %s114 = sphi 0, %s113
    %s128 = sphi 0, %s114
    %s132 = sphi 0, %s132
    %s134 = sphi 0, %s132
    %s135 = sphi 0, %s134
    %s149 = sphi 0, %s135
    %s153 = sphi 0, %s153
    %s155 = sphi 0, %s153
    %s156 = sphi 0, %s155
    %s170 = sphi 0, %s156
    %s176 = sphi 0, %s178
    %s179 = sphi 0, %s176
    %s180 = sphi 0, %s179
    %s196 = sphi 0, %s180
  $region4: #{tpu_custom_call.1} parent=0 // loop_header_branch
    %17 = sbr.rel (%p15) target = $region8
  $region5: #{tpu_custom_call.1} parent=0 // loop_body
    %s19 = ssub.s32 %s14, 1
    %s20 = ssub.s32 %s14, 2
    %s21 = sadd.s32 %s14, 1
    %s22 = ssub.s32 %s14, %s21
    %p23 = scmp.eq.s32.totalorder %s22, 0
    %s25 = sadd.s32 %s24, 1
    %s26 = scalar_select %p23, %s24, %s25
    %p29 = pneg %p23
    %p30 = scmp.eq.s32.totalorder %s14, 1
    %p31 = por %p29, %p30
    %p32 = scmp.ne.s32.totalorder %s24, %s27
    %p33 = scmp.eq.s32.totalorder %s14, 0
    %p34 = por %p32, %p33
    %p35 = scmp.ne.s32.totalorder %s24, %s27
    %p36 = scmp.eq.s32.totalorder %s19, 1
    %p37 = por %p35, %p36
    %p38 = scmp.ne.s32.totalorder %s27, %s28
    %p39 = scmp.eq.s32.totalorder %s19, 0
    %p40 = por %p38, %p39
    %p41 = scmp.ne.s32.totalorder %s27, %s28
    %p42 = scmp.eq.s32.totalorder %s20, 1
    %p43 = por %p41, %p42
    %p45 = scmp.ne.s32.totalorder %s28, %s44
    %p46 = scmp.eq.s32.totalorder %s20, 0
    %p47 = por %p45, %p46
    %s49 = sadd.s32 %s48, 1
    %p52 = scmp.eq.s32.totalorder %s14, 1
    %p53 = scmp.ne.s32.totalorder %s48, %s50
    %p54 = scmp.eq.s32.totalorder %s14, 0
    %p55 = por %p53, %p54
    %p56 = scmp.ne.s32.totalorder %s48, %s50
    %p57 = scmp.eq.s32.totalorder %s19, 1
    %p58 = por %p56, %p57
    %p59 = scmp.ne.s32.totalorder %s50, %s51
    %p60 = scmp.eq.s32.totalorder %s19, 0
    %p61 = por %p59, %p60
    %p62 = scmp.ne.s32.totalorder %s50, %s51
    %p63 = scmp.eq.s32.totalorder %s20, 1
    %p64 = por %p62, %p63
    %p66 = scmp.ne.s32.totalorder %s51, %s65
    %p67 = scmp.eq.s32.totalorder %s20, 0
    %p68 = por %p66, %p67
    %s70 = sadd.s32 %s69, 1
    %p73 = scmp.eq.s32.totalorder %s14, 1
    %p74 = scmp.ne.s32.totalorder %s69, %s71
    %p75 = scmp.eq.s32.totalorder %s14, 0
    %p76 = por %p74, %p75
    %p77 = scmp.ne.s32.totalorder %s69, %s71
    %p78 = scmp.eq.s32.totalorder %s19, 1
    %p79 = por %p77, %p78
    %p80 = scmp.ne.s32.totalorder %s71, %s72
    %p81 = scmp.eq.s32.totalorder %s19, 0
    %p82 = por %p80, %p81
    %p83 = scmp.ne.s32.totalorder %s71, %s72
    %p84 = scmp.eq.s32.totalorder %s20, 1
    %p85 = por %p83, %p84
    %p87 = scmp.ne.s32.totalorder %s72, %s86
    %p88 = scmp.eq.s32.totalorder %s20, 0
    %p89 = por %p87, %p88
    %s91 = sadd.s32 %s90, 1
    %p94 = scmp.eq.s32.totalorder %s14, 1
    %p95 = scmp.ne.s32.totalorder %s90, %s92
    %p96 = scmp.eq.s32.totalorder %s14, 0
    %p97 = por %p95, %p96
    %p98 = scmp.ne.s32.totalorder %s90, %s92
    %p99 = scmp.eq.s32.totalorder %s19, 1
    %p100 = por %p98, %p99
    %p101 = scmp.ne.s32.totalorder %s92, %s93
    %p102 = scmp.eq.s32.totalorder %s19, 0
    %p103 = por %p101, %p102
    %p104 = scmp.ne.s32.totalorder %s92, %s93
    %p105 = scmp.eq.s32.totalorder %s20, 1
    %p106 = por %p104, %p105
    %p108 = scmp.ne.s32.totalorder %s93, %s107
    %p109 = scmp.eq.s32.totalorder %s20, 0
    %p110 = por %p108, %p109
    %s112 = sadd.s32 %s111, 1
    %p115 = scmp.eq.s32.totalorder %s14, 1
    %p116 = scmp.ne.s32.totalorder %s111, %s113
    %p117 = scmp.eq.s32.totalorder %s14, 0
    %p118 = por %p116, %p117
    %p119 = scmp.ne.s32.totalorder %s111, %s113
    %p120 = scmp.eq.s32.totalorder %s19, 1
    %p121 = por %p119, %p120
    %p122 = scmp.ne.s32.totalorder %s113, %s114
    %p123 = scmp.eq.s32.totalorder %s19, 0
    %p124 = por %p122, %p123
    %p125 = scmp.ne.s32.totalorder %s113, %s114
    %p126 = scmp.eq.s32.totalorder %s20, 1
    %p127 = por %p125, %p126
    %p129 = scmp.ne.s32.totalorder %s114, %s128
    %p130 = scmp.eq.s32.totalorder %s20, 0
    %p131 = por %p129, %p130
    %s133 = sadd.s32 %s132, 1
    %p136 = scmp.eq.s32.totalorder %s14, 1
    %p137 = scmp.ne.s32.totalorder %s132, %s134
    %p138 = scmp.eq.s32.totalorder %s14, 0
    %p139 = por %p137, %p138
    %p140 = scmp.ne.s32.totalorder %s132, %s134
    %p141 = scmp.eq.s32.totalorder %s19, 1
    %p142 = por %p140, %p141
    %p143 = scmp.ne.s32.totalorder %s134, %s135
    %p144 = scmp.eq.s32.totalorder %s19, 0
    %p145 = por %p143, %p144
    %p146 = scmp.ne.s32.totalorder %s134, %s135
    %p147 = scmp.eq.s32.totalorder %s20, 1
    %p148 = por %p146, %p147
    %p150 = scmp.ne.s32.totalorder %s135, %s149
    %p151 = scmp.eq.s32.totalorder %s20, 0
    %p152 = por %p150, %p151
    %s154 = sadd.s32 %s153, 1
    %p157 = scmp.eq.s32.totalorder %s14, 1
    %p158 = scmp.ne.s32.totalorder %s153, %s155
    %p159 = scmp.eq.s32.totalorder %s14, 0
    %p160 = por %p158, %p159
    %p161 = scmp.ne.s32.totalorder %s153, %s155
    %p162 = scmp.eq.s32.totalorder %s19, 1
    %p163 = por %p161, %p162
    %p164 = scmp.ne.s32.totalorder %s155, %s156
    %p165 = scmp.eq.s32.totalorder %s19, 0
    %p166 = por %p164, %p165
    %p167 = scmp.ne.s32.totalorder %s155, %s156
    %p168 = scmp.eq.s32.totalorder %s20, 1
    %p169 = por %p167, %p168
    %p171 = scmp.ne.s32.totalorder %s156, %s170
    %p172 = scmp.eq.s32.totalorder %s20, 0
    %p173 = por %p171, %p172
    %s174 = ssub.s32 %s14, %s21
    %p175 = scmp.eq.s32.totalorder %s174, 0
    %s177 = sadd.s32 %s176, 1
    %s178 = scalar_select %p175, %s176, %s177
    %p181 = pneg %p175
    %p182 = scmp.eq.s32.totalorder %s14, 1
    %p183 = por %p181, %p182
    %p184 = scmp.ne.s32.totalorder %s176, %s179
    %p185 = scmp.eq.s32.totalorder %s14, 0
    %p186 = por %p184, %p185
    %p187 = scmp.ne.s32.totalorder %s176, %s179
    %p188 = scmp.eq.s32.totalorder %s19, 1
    %p189 = por %p187, %p188
    %p190 = scmp.ne.s32.totalorder %s179, %s180
    %p191 = scmp.eq.s32.totalorder %s19, 0
    %p192 = por %p190, %p191
    %p193 = scmp.ne.s32.totalorder %s179, %s180
    %p194 = scmp.eq.s32.totalorder %s20, 1
    %p195 = por %p193, %p194
    %p197 = scmp.ne.s32.totalorder %s180, %s196
    %p198 = scmp.eq.s32.totalorder %s20, 0
    %p199 = por %p197, %p198
    %p200 = scmp.le.s32.totalorder 1, %s14
    %p201 = scmp.lt.s32.totalorder %s14, 3
    %p202 = pnand %p200, %p201
    %p203 = pneg %p202
    // Predicated region
    $region9: #{tpu_custom_call.1} parent=5 // pred_check
      _
    $region10: #{tpu_custom_call.1} parent=5 // pred_check_branch
      %205 = sbr.rel (%p202) target = $region12
    $region11: #{tpu_custom_call.1} parent=5 // pred_region
      %s206 = ssub.s32 %s14, 1
      // Predicated region
      $region13: #{tpu_custom_call.1} parent=11 // pred_check
        %p207 = pneg %p61
      $region14: #{tpu_custom_call.1} parent=11 // pred_check_branch
        %209 = sbr.rel (%p207) target = $region16
      $region15: #{tpu_custom_call.1} parent=11 // pred_region
        _
      $region16: #{tpu_custom_call.1} parent=11 // pred_fallthru
        _
      // Predicated region
      $region17: #{tpu_custom_call.1} parent=11 // pred_check
        %p210 = pneg %p82
      $region18: #{tpu_custom_call.1} parent=11 // pred_check_branch
        %212 = sbr.rel (%p210) target = $region20
      $region19: #{tpu_custom_call.1} parent=11 // pred_region
        _
      $region20: #{tpu_custom_call.1} parent=11 // pred_fallthru
        _
      // Predicated region
      $region21: #{tpu_custom_call.1} parent=11 // pred_check
        %p213 = pneg %p103
      $region22: #{tpu_custom_call.1} parent=11 // pred_check_branch
        %215 = sbr.rel (%p213) target = $region24
      $region23: #{tpu_custom_call.1} parent=11 // pred_region
        _
      $region24: #{tpu_custom_call.1} parent=11 // pred_fallthru
        _
      // Predicated region
      $region25: #{tpu_custom_call.1} parent=11 // pred_check
        %p216 = pneg %p124
      $region26: #{tpu_custom_call.1} parent=11 // pred_check_branch
        %218 = sbr.rel (%p216) target = $region28
      $region27: #{tpu_custom_call.1} parent=11 // pred_region
        _
      $region28: #{tpu_custom_call.1} parent=11 // pred_fallthru
        _
      // Predicated region
      $region29: #{tpu_custom_call.1} parent=11 // pred_check
        %p219 = pneg %p145
      $region30: #{tpu_custom_call.1} parent=11 // pred_check_branch
        %221 = sbr.rel (%p219) target = $region32
      $region31: #{tpu_custom_call.1} parent=11 // pred_region
        _
      $region32: #{tpu_custom_call.1} parent=11 // pred_fallthru
        _
      // Predicated region
      $region33: #{tpu_custom_call.1} parent=11 // pred_check
        %p222 = pneg %p166
      $region34: #{tpu_custom_call.1} parent=11 // pred_check_branch
        %224 = sbr.rel (%p222) target = $region36
      $region35: #{tpu_custom_call.1} parent=11 // pred_region
        _
      $region36: #{tpu_custom_call.1} parent=11 // pred_fallthru
        _
    $region12: #{tpu_custom_call.1} parent=5 // pred_fallthru
      _
    %p225 = scmp.lt.s32.totalorder %s14, 2
    // Predicated region
    $region37: #{tpu_custom_call.1} parent=5 // pred_check
      %p226 = pneg %p225
    $region38: #{tpu_custom_call.1} parent=5 // pred_check_branch
      %228 = sbr.rel (%p226) target = $region40
    $region39: #{tpu_custom_call.1} parent=5 // pred_region
      // Predicated region
      $region41: #{tpu_custom_call.1} parent=39 // pred_check
        %p229 = pneg %p34
      $region42: #{tpu_custom_call.1} parent=39 // pred_check_branch
        %231 = sbr.rel (%p229) target = $region44
      $region43: #{tpu_custom_call.1} parent=39 // pred_region
        %s232 = smul.u32 24, %s14
        %p233 = scmp.lt.s32.totalorder %s232, 47
        %s234 = scalar_select %p233, %s232, 47
        %s235 = smul.addr %s234, 8
        %s236 = scalar_lea.vmem %s0, %s235
        %s237 = smul.u32 24, %s14
      $region44: #{tpu_custom_call.1} parent=39 // pred_fallthru
        _
    $region40: #{tpu_custom_call.1} parent=5 // pred_fallthru
      _
    %p238 = scmp.le.s32.totalorder 1, %s14
    %p239 = scmp.lt.s32.totalorder %s14, 3
    %p240 = pnand %p238, %p239
    %p241 = pneg %p240
    // Predicated region
    $region45: #{tpu_custom_call.1} parent=5 // pred_check
      _
    $region46: #{tpu_custom_call.1} parent=5 // pred_check_branch
      %243 = sbr.rel (%p240) target = $region48
    $region47: #{tpu_custom_call.1} parent=5 // pred_region
      %s244 = ssub.s32 %s14, 1
      %s245 = smul.u32 24, %s19
      %p246 = scmp.lt.s32.totalorder %s245, 47
      %s247 = scalar_select %p246, %s245, 47
      %s248 = smul.addr %s247, 8
      %s249 = scalar_lea.vmem %s0, %s248
      %p250 = pneg %p40
      %p251 = pneg %p37
      %p252 = pneg %p61
      %p253 = pneg %p58
      %p254 = pneg %p82
      %p255 = pneg %p79
      %p256 = pneg %p103
      %p257 = pneg %p100
      %p258 = pneg %p124
      %p259 = pneg %p121
      %p260 = pneg %p145
      %p261 = pneg %p142
      %p262 = pneg %p166
      %p263 = pneg %p163
      %p264 = pneg %p192
      %p265 = pneg %p189
      %s266 = smul.u32 24, %s19
      %p267 = scmp.lt.s32.totalorder %s266, 47
      %s268 = scalar_select %p267, %s266, 47
      %s269 = smul.addr %s268, 8
      %s270 = scalar_lea.vmem %s7, %s269
      %s271 = smul.u32 24, %s19
      %p272 = scmp.lt.s32.totalorder %s271, 47
      %s273 = scalar_select %p272, %s271, 47
      %s274 = smul.addr %s273, 8
      %s275 = scalar_lea.vmem %s0, %s274
      %s276 = smul.u32 24, %s19
      %s277 = smul.u32 24, %s19
      %p278 = scmp.lt.s32.totalorder %s277, 47
      %s279 = scalar_select %p278, %s277, 47
      %s280 = smul.addr %s279, 8
      %s281 = scalar_lea.vmem %s7, %s280
      %s282 = smul.u32 24, %s19
      %v284 = vld [vmem:[%s275] sm:$0xff]
      %v285 = vld [vmem:[%s275 + $0x8] sm:$0xff]
      %v286 = vld [vmem:[%s275 + $0x10] sm:$0xff]
      %v287 = vld [vmem:[%s275 + $0x18] sm:$0xff]
      %v288 = vld [vmem:[%s275 + $0x20] sm:$0xff]
      %v289 = vld [vmem:[%s275 + $0x28] sm:$0xff]
      %v290 = vld [vmem:[%s275 + $0x30] sm:$0xff]
      %v291 = vld [vmem:[%s275 + $0x38] sm:$0xff]
      %v292 = vld [vmem:[%s275 + $0x40] sm:$0xff]
      %v293 = vld [vmem:[%s275 + $0x48] sm:$0xff]
      %v294 = vld [vmem:[%s275 + $0x50] sm:$0xff]
      %v295 = vld [vmem:[%s275 + $0x58] sm:$0xff]
      %v296 = vld [vmem:[%s275 + $0x60] sm:$0xff]
      %v297 = vld [vmem:[%s275 + $0x68] sm:$0xff]
      %v298 = vld [vmem:[%s275 + $0x70] sm:$0xff]
      %v299 = vld [vmem:[%s275 + $0x78] sm:$0xff]
      %v300 = vld [vmem:[%s275 + $0x80] sm:$0xff]
      %v301 = vld [vmem:[%s275 + $0x88] sm:$0xff]
      %v302 = vld [vmem:[%s275 + $0x90] sm:$0xff]
      %v303 = vld [vmem:[%s275 + $0x98] sm:$0xff]
      %v304 = vld [vmem:[%s275 + $0xa0] sm:$0xff]
      %v305 = vld [vmem:[%s275 + $0xa8] sm:$0xff]
      %v306 = vld [vmem:[%s275 + $0xb0] sm:$0xff]
      %v307 = vld [vmem:[%s275 + $0xb8] sm:$0xff]
      %v308 = vpack.c.bf16 %v285, %v284
      %v309 = vpack.c.bf16 %v287, %v286
      %v310 = vpack.c.bf16 %v289, %v288
      %v311 = vpack.c.bf16 %v291, %v290
      %v312 = vpack.c.bf16 %v293, %v292
      %v313 = vpack.c.bf16 %v295, %v294
      %v314 = vpack.c.bf16 %v297, %v296
      %v315 = vpack.c.bf16 %v299, %v298
      %v316 = vpack.c.bf16 %v301, %v300
      %v317 = vpack.c.bf16 %v303, %v302
      %v318 = vpack.c.bf16 %v305, %v304
      %v319 = vpack.c.bf16 %v307, %v306
      %v320 = vld [vmem:[%s1] sm:$0xff]
      %v321 = vld [vmem:[%s1 + $0x8] sm:$0xff]
      %v322 = vld [vmem:[%s2] sm:$0x3]
      %v324 = vlaneseq
      %v325 = vshrl.u32 %v324, 7
      %v326 = vsub.s32 0, %v325
      %v327 = vrot.slane %v322, %v326
      %v328 = vlaneseq
      %v329 = vshrl.u32 %v328, 7
      %v330 = vsub.s32 1, %v329
      %v331 = vrot.slane %v322, %v330
      %v336 = vunpack.c.l.b16 %v320
      %v337 = vunpack.c.h.b16 %v320
      %v338 = vunpack.c.l.b16 %v321
      %v339 = vunpack.c.h.b16 %v321
      %v340 = vpack.c.b16 %v338, %v336
      %v341 = vpack.c.b16 %v339, %v337
      %vm344 = vcmask 130048
      %v346 = vsel %vm344, %v308, 0
      %v349 = vsel %vm344, %v309, 0
      %v352 = vsel %vm344, %v310, 0
      %v355 = vsel %vm344, %v311, 0
      %v358 = vsel %vm344, %v312, 0
      %v361 = vsel %vm344, %v313, 0
      %v364 = vsel %vm344, %v314, 0
      %v367 = vsel %vm344, %v315, 0
      %v370 = vsel %vm344, %v316, 0
      %v373 = vsel %vm344, %v317, 0
      %v376 = vsel %vm344, %v318, 0
      %v379 = vsel %vm344, %v319, 0
      %381 = vmatprep.subr.bf16.mxu0 %v341
      %382 = vmatpush1.bf16.msra.mxu0 %v340
      %383 = vmatprep.subr.bf16.mxu0 0
      %384 = vmatpush1.bf16.msra.mxu0 0
      %385 = vmatprep.subr.bf16.mxu0 0
      %386 = vmatpush1.bf16.msra.mxu0 0
      %387 = vmatprep.subr.bf16.mxu0 0
      %388 = vmatpush1.bf16.msra.mxu0 0
      %389 = vmatprep.subr.bf16.mxu0 0
      %390 = vmatpush1.bf16.msra.mxu0 0
      %391 = vmatprep.subr.bf16.mxu0 0
      %392 = vmatpush1.bf16.msra.mxu0 0
      %393 = vmatprep.subr.bf16.mxu0 0
      %394 = vmatpush1.bf16.msra.mxu0 0
      %395 = vmatprep.subr.bf16.mxu0 0
      %396 = vmatpush1.bf16.msra.mxu0 0
      %397 = vmatprep.subr.bf16.mxu0 0
      %398 = vmatpush1.bf16.msra.mxu0 0
      %399 = vmatprep.subr.bf16.mxu0 0
      %400 = vmatpush1.bf16.msra.mxu0 0
      %401 = vmatprep.subr.bf16.mxu0 0
      %402 = vmatpush1.bf16.msra.mxu0 0
      %403 = vmatprep.subr.bf16.mxu0 0
      %404 = vmatpush1.bf16.msra.mxu0 0
      %405 = vmatprep.subr.bf16.mxu0 0
      %406 = vmatpush1.bf16.msra.mxu0 0
      %407 = vmatprep.subr.bf16.mxu0 0
      %408 = vmatpush1.bf16.msra.mxu0 0
      %409 = vmatprep.subr.bf16.mxu0 0
      %410 = vmatpush1.bf16.msra.mxu0 0
      %411 = vmatprep.subr.bf16.mxu0 0
      %412 = vmatpush1.bf16.msra.mxu0 0
      %413 = vmatprep.mubr.bf16.mxu0 0
      %414 = vmatmul.mubr.bf16.gmra.mrb[0].mxu0 %v346
      %v415 = vpop.f32.mrb[0].mxu0
      %v416 = vadd.f32 %v327, %v415
      %v417 = vpop.f32.mrb[0].mxu0
      %v418 = vadd.f32 %v331, %v417
      %v419 = vpop.f32.mrb[0].mxu0
      %v420 = vadd.f32 %v327, %v419
      %v421 = vpop.f32.mrb[0].mxu0
      %v422 = vadd.f32 %v331, %v421
      %423 = vmatprep.mubr.bf16.mxu0 0
      %424 = vmatmul.mubr.bf16.gmra.mrb[0].mxu0 %v349
      %v425 = vpop.f32.mrb[0].mxu0
      %v426 = vadd.f32 %v327, %v425
      %v427 = vpop.f32.mrb[0].mxu0
      %v428 = vadd.f32 %v331, %v427
      %v429 = vpop.f32.mrb[0].mxu0
      %v430 = vadd.f32 %v327, %v429
      %v431 = vpop.f32.mrb[0].mxu0
      %v432 = vadd.f32 %v331, %v431
      %433 = vmatprep.mubr.bf16.mxu0 0
      %434 = vmatmul.mubr.bf16.gmra.mrb[0].mxu0 %v352
      %v435 = vpop.f32.mrb[0].mxu0
      %v436 = vadd.f32 %v327, %v435
      %v437 = vpop.f32.mrb[0].mxu0
      %v438 = vadd.f32 %v331, %v437
      %v439 = vpop.f32.mrb[0].mxu0
      %v440 = vadd.f32 %v327, %v439
      %v441 = vpop.f32.mrb[0].mxu0
      %v442 = vadd.f32 %v331, %v441
      %443 = vmatprep.mubr.bf16.mxu0 0
      %444 = vmatmul.mubr.bf16.gmra.mrb[0].mxu0 %v355
      %v445 = vpop.f32.mrb[0].mxu0
      %v446 = vadd.f32 %v327, %v445
      %v447 = vpop.f32.mrb[0].mxu0
      %v448 = vadd.f32 %v331, %v447
      %v449 = vpop.f32.mrb[0].mxu0
      %v450 = vadd.f32 %v327, %v449
      %v451 = vpop.f32.mrb[0].mxu0
      %v452 = vadd.f32 %v331, %v451
      %453 = vmatprep.mubr.bf16.mxu0 0
      %454 = vmatmul.mubr.bf16.gmra.mrb[0].mxu0 %v358
      %v455 = vpop.f32.mrb[0].mxu0
      %v456 = vadd.f32 %v327, %v455
      %v457 = vpop.f32.mrb[0].mxu0
      %v458 = vadd.f32 %v331, %v457
      %v459 = vpop.f32.mrb[0].mxu0
      %v460 = vadd.f32 %v327, %v459
      %v461 = vpop.f32.mrb[0].mxu0
      %v462 = vadd.f32 %v331, %v461
      %463 = vmatprep.mubr.bf16.mxu0 0
      %464 = vmatmul.mubr.bf16.gmra.mrb[0].mxu0 %v361
      %v465 = vpop.f32.mrb[0].mxu0
      %v466 = vadd.f32 %v327, %v465
      %v467 = vpop.f32.mrb[0].mxu0
      %v468 = vadd.f32 %v331, %v467
      %v469 = vpop.f32.mrb[0].mxu0
      %v470 = vadd.f32 %v327, %v469
      %v471 = vpop.f32.mrb[0].mxu0
      %v472 = vadd.f32 %v331, %v471
      %473 = vmatprep.mubr.bf16.mxu0 0
      %474 = vmatmul.mubr.bf16.gmra.mrb[0].mxu0 %v364
      %v475 = vpop.f32.mrb[0].mxu0
      %v476 = vadd.f32 %v327, %v475
      %v477 = vpop.f32.mrb[0].mxu0
      %v478 = vadd.f32 %v331, %v477
      %v479 = vpop.f32.mrb[0].mxu0
      %v480 = vadd.f32 %v327, %v479
      %v481 = vpop.f32.mrb[0].mxu0
      %v482 = vadd.f32 %v331, %v481
      %483 = vmatprep.mubr.bf16.mxu0 0
      %484 = vmatmul.mubr.bf16.gmra.mrb[0].mxu0 %v367
      %v485 = vpop.f32.mrb[0].mxu0
      %v486 = vadd.f32 %v327, %v485
      %v487 = vpop.f32.mrb[0].mxu0
      %v488 = vadd.f32 %v331, %v487
      %v489 = vpop.f32.mrb[0].mxu0
      %v490 = vadd.f32 %v327, %v489
      %v491 = vpop.f32.mrb[0].mxu0
      %v492 = vadd.f32 %v331, %v491
      %493 = vmatprep.mubr.bf16.mxu0 0
      %494 = vmatmul.mubr.bf16.gmra.mrb[0].mxu0 %v370
      %v495 = vpop.f32.mrb[0].mxu0
      %v496 = vadd.f32 %v327, %v495
      %v497 = vpop.f32.mrb[0].mxu0
      %v498 = vadd.f32 %v331, %v497
      %v499 = vpop.f32.mrb[0].mxu0
      %v500 = vadd.f32 %v327, %v499
      %v501 = vpop.f32.mrb[0].mxu0
      %v502 = vadd.f32 %v331, %v501
      %503 = vmatprep.mubr.bf16.mxu0 0
      %504 = vmatmul.mubr.bf16.gmra.mrb[0].mxu0 %v373
      %v505 = vpop.f32.mrb[0].mxu0
      %v506 = vadd.f32 %v327, %v505
      %v507 = vpop.f32.mrb[0].mxu0
      %v508 = vadd.f32 %v331, %v507
      %v509 = vpop.f32.mrb[0].mxu0
      %v510 = vadd.f32 %v327, %v509
      %v511 = vpop.f32.mrb[0].mxu0
      %v512 = vadd.f32 %v331, %v511
      %513 = vmatprep.mubr.bf16.mxu0 0
      %514 = vmatmul.mubr.bf16.gmra.mrb[0].mxu0 %v376
      %v515 = vpop.f32.mrb[0].mxu0
      %v516 = vadd.f32 %v327, %v515
      %v517 = vpop.f32.mrb[0].mxu0
      %v518 = vadd.f32 %v331, %v517
      %v519 = vpop.f32.mrb[0].mxu0
      %v520 = vadd.f32 %v327, %v519
      %v521 = vpop.f32.mrb[0].mxu0
      %v522 = vadd.f32 %v331, %v521
      %523 = vmatprep.mubr.bf16.mxu0 0
      %524 = vmatmul.mubr.bf16.gmra.mrb[0].mxu0 %v379
      %v525 = vpop.f32.mrb[0].mxu0
      %v526 = vadd.f32 %v327, %v525
      %v527 = vpop.f32.mrb[0].mxu0
      %v528 = vadd.f32 %v331, %v527
      %v529 = vpop.f32.mrb[0].mxu0
      %v530 = vadd.f32 %v327, %v529
      %v531 = vpop.f32.mrb[0].mxu0
      %v532 = vadd.f32 %v331, %v531
      %533 = vdwg.mxu0
      %v534 = vmax.f32 %v416, 0.0
      %v535 = vmax.f32 %v418, 0.0
      %v536 = vmax.f32 %v420, 0.0
      %v537 = vmax.f32 %v422, 0.0
      %v538 = vmax.f32 %v426, 0.0
      %v539 = vmax.f32 %v428, 0.0
      %v540 = vmax.f32 %v430, 0.0
      %v541 = vmax.f32 %v432, 0.0
      %v542 = vmax.f32 %v436, 0.0
      %v543 = vmax.f32 %v438, 0.0
      %v544 = vmax.f32 %v440, 0.0
      %v545 = vmax.f32 %v442, 0.0
      %v546 = vmax.f32 %v446, 0.0
      %v547 = vmax.f32 %v448, 0.0
      %v548 = vmax.f32 %v450, 0.0
      %v549 = vmax.f32 %v452, 0.0
      %v550 = vmax.f32 %v456, 0.0
      %v551 = vmax.f32 %v458, 0.0
      %v552 = vmax.f32 %v460, 0.0
      %v553 = vmax.f32 %v462, 0.0
      %v554 = vmax.f32 %v466, 0.0
      %v555 = vmax.f32 %v468, 0.0
      %v556 = vmax.f32 %v470, 0.0
      %v557 = vmax.f32 %v472, 0.0
      %v558 = vmax.f32 %v476, 0.0
      %v559 = vmax.f32 %v478, 0.0
      %v560 = vmax.f32 %v480, 0.0
      %v561 = vmax.f32 %v482, 0.0
      %v562 = vmax.f32 %v486, 0.0
      %v563 = vmax.f32 %v488, 0.0
      %v564 = vmax.f32 %v490, 0.0
      %v565 = vmax.f32 %v492, 0.0
      %v566 = vmax.f32 %v496, 0.0
      %v567 = vmax.f32 %v498, 0.0
      %v568 = vmax.f32 %v500, 0.0
      %v569 = vmax.f32 %v502, 0.0
      %v570 = vmax.f32 %v506, 0.0
      %v571 = vmax.f32 %v508, 0.0
      %v572 = vmax.f32 %v510, 0.0
      %v573 = vmax.f32 %v512, 0.0
      %v574 = vmax.f32 %v516, 0.0
      %v575 = vmax.f32 %v518, 0.0
      %v576 = vmax.f32 %v520, 0.0
      %v577 = vmax.f32 %v522, 0.0
      %v578 = vmax.f32 %v526, 0.0
      %v579 = vmax.f32 %v528, 0.0
      %v580 = vmax.f32 %v530, 0.0
      %v581 = vmax.f32 %v532, 0.0
      %v582 = vpack.c.bf16 %v536, %v534
      %v583 = vpack.c.bf16 %v537, %v535
      %v584 = vpack.c.bf16 %v540, %v538
      %v585 = vpack.c.bf16 %v541, %v539
      %v586 = vpack.c.bf16 %v544, %v542
      %v587 = vpack.c.bf16 %v545, %v543
      %v588 = vpack.c.bf16 %v548, %v546
      %v589 = vpack.c.bf16 %v549, %v547
      %v590 = vpack.c.bf16 %v552, %v550
      %v591 = vpack.c.bf16 %v553, %v551
      %v592 = vpack.c.bf16 %v556, %v554
      %v593 = vpack.c.bf16 %v557, %v555
      %v594 = vpack.c.bf16 %v560, %v558
      %v595 = vpack.c.bf16 %v561, %v559
      %v596 = vpack.c.bf16 %v564, %v562
      %v597 = vpack.c.bf16 %v565, %v563
      %v598 = vpack.c.bf16 %v568, %v566
      %v599 = vpack.c.bf16 %v569, %v567
      %v600 = vpack.c.bf16 %v572, %v570
      %v601 = vpack.c.bf16 %v573, %v571
      %v602 = vpack.c.bf16 %v576, %v574
      %v603 = vpack.c.bf16 %v577, %v575
      %v604 = vpack.c.bf16 %v580, %v578
      %v605 = vpack.c.bf16 %v581, %v579
      %v606 = vld [vmem:[%s3] sm:$0xff]
      %v607 = vld [vmem:[%s3 + $0x8] sm:$0xff]
      %v608 = vld [vmem:[%s3 + $0x10] sm:$0xff]
      %v609 = vld [vmem:[%s3 + $0x18] sm:$0xff]
      %v610 = vld [vmem:[%s3 + $0x20] sm:$0xff]
      %v611 = vld [vmem:[%s3 + $0x28] sm:$0xff]
      %v612 = vld [vmem:[%s3 + $0x30] sm:$0xff]
      %v613 = vld [vmem:[%s3 + $0x38] sm:$0xff]
      %v614 = vld [vmem:[%s3 + $0x40] sm:$0xff]
      %v615 = vld [vmem:[%s3 + $0x48] sm:$0xff]
      %v616 = vld [vmem:[%s3 + $0x50] sm:$0xff]
      %v617 = vld [vmem:[%s3 + $0x58] sm:$0xff]
      %v618 = vld [vmem:[%s3 + $0x60] sm:$0xff]
      %v619 = vld [vmem:[%s3 + $0x68] sm:$0xff]
      %v620 = vld [vmem:[%s3 + $0x70] sm:$0xff]
      %v621 = vld [vmem:[%s3 + $0x78] sm:$0xff]
      %v622 = vld [vmem:[%s3 + $0x80] sm:$0xff]
      %v623 = vld [vmem:[%s3 + $0x88] sm:$0xff]
      %v624 = vld [vmem:[%s3 + $0x90] sm:$0xff]
      %v625 = vld [vmem:[%s3 + $0x98] sm:$0xff]
      %v626 = vld [vmem:[%s3 + $0xa0] sm:$0xff]
      %v627 = vld [vmem:[%s3 + $0xa8] sm:$0xff]
      %v628 = vld [vmem:[%s3 + $0xb0] sm:$0xff]
      %v629 = vld [vmem:[%s3 + $0xb8] sm:$0xff]
      %v630 = vld [vmem:[%s3 + $0xc0] sm:$0xff]
      %v631 = vld [vmem:[%s3 + $0xc8] sm:$0xff]
      %v632 = vld [vmem:[%s3 + $0xd0] sm:$0xff]
      %v633 = vld [vmem:[%s3 + $0xd8] sm:$0xff]
      %v634 = vld [vmem:[%s3 + $0xe0] sm:$0xff]
      %v635 = vld [vmem:[%s3 + $0xe8] sm:$0xff]
      %v636 = vld [vmem:[%s3 + $0xf0] sm:$0xff]
      %v637 = vld [vmem:[%s3 + $0xf8] sm:$0xff]
      %v638 = vld [vmem:[%s4] sm:$0x3]
      %v640 = vlaneseq
      %v641 = vshrl.u32 %v640, 7
      %v642 = vsub.s32 0, %v641
      %v643 = vrot.slane %v638, %v642
      %v644 = vlaneseq
      %v645 = vshrl.u32 %v644, 7
      %v646 = vsub.s32 1, %v645
      %v647 = vrot.slane %v638, %v646
      %v682 = vunpack.c.l.b16 %v606
      %v683 = vunpack.c.h.b16 %v606
      %v684 = vunpack.c.l.b16 %v607
      %v685 = vunpack.c.h.b16 %v607
      %v686 = vunpack.c.l.b16 %v608
      %v687 = vunpack.c.h.b16 %v608
      %v688 = vunpack.c.l.b16 %v609
      %v689 = vunpack.c.h.b16 %v609
      %v690 = vunpack.c.l.b16 %v610
      %v691 = vunpack.c.h.b16 %v610
      %v692 = vunpack.c.l.b16 %v611
      %v693 = vunpack.c.h.b16 %v611
      %v694 = vunpack.c.l.b16 %v612
      %v695 = vunpack.c.h.b16 %v612
      %v696 = vunpack.c.l.b16 %v613
      %v697 = vunpack.c.h.b16 %v613
      %v698 = vunpack.c.l.b16 %v614
      %v699 = vunpack.c.h.b16 %v614
      %v700 = vunpack.c.l.b16 %v615
      %v701 = vunpack.c.h.b16 %v615
      %v702 = vunpack.c.l.b16 %v616
      %v703 = vunpack.c.h.b16 %v616
      %v704 = vunpack.c.l.b16 %v617
      %v705 = vunpack.c.h.b16 %v617
      %v706 = vunpack.c.l.b16 %v618
      %v707 = vunpack.c.h.b16 %v618
      %v708 = vunpack.c.l.b16 %v619
      %v709 = vunpack.c.h.b16 %v619
      %v710 = vunpack.c.l.b16 %v620
      %v711 = vunpack.c.h.b16 %v620
      %v712 = vunpack.c.l.b16 %v621
      %v713 = vunpack.c.h.b16 %v621
      %v714 = vunpack.c.l.b16 %v622
      %v715 = vunpack.c.h.b16 %v622
      %v716 = vunpack.c.l.b16 %v623
      %v717 = vunpack.c.h.b16 %v623
      %v718 = vunpack.c.l.b16 %v624
      %v719 = vunpack.c.h.b16 %v624
      %v720 = vunpack.c.l.b16 %v625
      %v721 = vunpack.c.h.b16 %v625
      %v722 = vunpack.c.l.b16 %v626
      %v723 = vunpack.c.h.b16 %v626
      %v724 = vunpack.c.l.b16 %v627
      %v725 = vunpack.c.h.b16 %v627
      %v726 = vunpack.c.l.b16 %v628
      %v727 = vunpack.c.h.b16 %v628
      %v728 = vunpack.c.l.b16 %v629
      %v729 = vunpack.c.h.b16 %v629
      %v730 = vunpack.c.l.b16 %v630
      %v731 = vunpack.c.h.b16 %v630
      %v732 = vunpack.c.l.b16 %v631
      %v733 = vunpack.c.h.b16 %v631
      %v734 = vunpack.c.l.b16 %v632
      %v735 = vunpack.c.h.b16 %v632
      %v736 = vunpack.c.l.b16 %v633
      %v737 = vunpack.c.h.b16 %v633
      %v738 = vunpack.c.l.b16 %v634
      %v739 = vunpack.c.h.b16 %v634
      %v740 = vunpack.c.l.b16 %v635
      %v741 = vunpack.c.h.b16 %v635
      %v742 = vunpack.c.l.b16 %v636
      %v743 = vunpack.c.h.b16 %v636
      %v744 = vunpack.c.l.b16 %v637
      %v745 = vunpack.c.h.b16 %v637
      %v746 = vpack.c.b16 %v684, %v682
      %v747 = vpack.c.b16 %v685, %v683
      %v748 = vpack.c.b16 %v688, %v686
      %v749 = vpack.c.b16 %v689, %v687
      %v750 = vpack.c.b16 %v692, %v690
      %v751 = vpack.c.b16 %v693, %v691
      %v752 = vpack.c.b16 %v696, %v694
      %v753 = vpack.c.b16 %v697, %v695
      %v754 = vpack.c.b16 %v700, %v698
      %v755 = vpack.c.b16 %v701, %v699
      %v756 = vpack.c.b16 %v704, %v702
      %v757 = vpack.c.b16 %v705, %v703
      %v758 = vpack.c.b16 %v708, %v706
      %v759 = vpack.c.b16 %v709, %v707
      %v760 = vpack.c.b16 %v712, %v710
      %v761 = vpack.c.b16 %v713, %v711
      %v762 = vpack.c.b16 %v716, %v714
      %v763 = vpack.c.b16 %v717, %v715
      %v764 = vpack.c.b16 %v720, %v718
      %v765 = vpack.c.b16 %v721, %v719
      %v766 = vpack.c.b16 %v724, %v722
      %v767 = vpack.c.b16 %v725, %v723
      %v768 = vpack.c.b16 %v728, %v726
      %v769 = vpack.c.b16 %v729, %v727
      %v770 = vpack.c.b16 %v732, %v730
      %v771 = vpack.c.b16 %v733, %v731
      %v772 = vpack.c.b16 %v736, %v734
      %v773 = vpack.c.b16 %v737, %v735
      %v774 = vpack.c.b16 %v740, %v738
      %v775 = vpack.c.b16 %v741, %v739
      %v776 = vpack.c.b16 %v744, %v742
      %v777 = vpack.c.b16 %v745, %v743
      %810 = vmatprep.subr.bf16.mxu0 %v747
      %811 = vmatpush1.bf16.msra.mxu0 %v746
      %812 = vmatprep.subr.bf16.mxu0 %v749
      %813 = vmatpush1.bf16.msra.mxu0 %v748
      %814 = vmatprep.subr.bf16.mxu0 %v751
      %815 = vmatpush1.bf16.msra.mxu0 %v750
      %816 = vmatprep.subr.bf16.mxu0 %v753
      %817 = vmatpush1.bf16.msra.mxu0 %v752
      %818 = vmatprep.subr.bf16.mxu0 %v755
      %819 = vmatpush1.bf16.msra.mxu0 %v754
      %820 = vmatprep.subr.bf16.mxu0 %v757
      %821 = vmatpush1.bf16.msra.mxu0 %v756
      %822 = vmatprep.subr.bf16.mxu0 %v759
      %823 = vmatpush1.bf16.msra.mxu0 %v758
      %824 = vmatprep.subr.bf16.mxu0 %v761
      %825 = vmatpush1.bf16.msra.mxu0 %v760
      %826 = vmatprep.subr.bf16.mxu0 %v763
      %827 = vmatpush1.bf16.msra.mxu0 %v762
      %828 = vmatprep.subr.bf16.mxu0 %v765
      %829 = vmatpush1.bf16.msra.mxu0 %v764
      %830 = vmatprep.subr.bf16.mxu0 %v767
      %831 = vmatpush1.bf16.msra.mxu0 %v766
      %832 = vmatprep.subr.bf16.mxu0 %v769
      %833 = vmatpush1.bf16.msra.mxu0 %v768
      %834 = vmatprep.subr.bf16.mxu0 %v771
      %835 = vmatpush1.bf16.msra.mxu0 %v770
      %836 = vmatprep.subr.bf16.mxu0 %v773
      %837 = vmatpush1.bf16.msra.mxu0 %v772
      %838 = vmatprep.subr.bf16.mxu0 %v775
      %839 = vmatpush1.bf16.msra.mxu0 %v774
      %840 = vmatprep.subr.bf16.mxu0 %v777
      %841 = vmatpush1.bf16.msra.mxu0 %v776
      %842 = vmatprep.mubr.bf16.mxu0 %v583
      %843 = vmatmul.mubr.bf16.gmra.mrb[0].mxu0 %v582
      %v844 = vpop.f32.mrb[0].mxu0
      %v845 = vadd.f32 %v643, %v844
      %v846 = vpop.f32.mrb[0].mxu0
      %v847 = vadd.f32 %v647, %v846
      %v848 = vpop.f32.mrb[0].mxu0
      %v849 = vadd.f32 %v643, %v848
      %v850 = vpop.f32.mrb[0].mxu0
      %v851 = vadd.f32 %v647, %v850
      %852 = vmatprep.mubr.bf16.mxu0 %v585
      %853 = vmatmul.mubr.bf16.gmra.mrb[0].mxu0 %v584
      %v854 = vpop.f32.mrb[0].mxu0
      %v855 = vadd.f32 %v643, %v854
      %v856 = vpop.f32.mrb[0].mxu0
      %v857 = vadd.f32 %v647, %v856
      %v858 = vpop.f32.mrb[0].mxu0
      %v859 = vadd.f32 %v643, %v858
      %v860 = vpop.f32.mrb[0].mxu0
      %v861 = vadd.f32 %v647, %v860
      %862 = vmatprep.mubr.bf16.mxu0 %v587
      %863 = vmatmul.mubr.bf16.gmra.mrb[0].mxu0 %v586
      %v864 = vpop.f32.mrb[0].mxu0
      %v865 = vadd.f32 %v643, %v864
      %v866 = vpop.f32.mrb[0].mxu0
      %v867 = vadd.f32 %v647, %v866
      %v868 = vpop.f32.mrb[0].mxu0
      %v869 = vadd.f32 %v643, %v868
      %v870 = vpop.f32.mrb[0].mxu0
      %v871 = vadd.f32 %v647, %v870
      %872 = vmatprep.mubr.bf16.mxu0 %v589
      %873 = vmatmul.mubr.bf16.gmra.mrb[0].mxu0 %v588
      %v874 = vpop.f32.mrb[0].mxu0
      %v875 = vadd.f32 %v643, %v874
      %v876 = vpop.f32.mrb[0].mxu0
      %v877 = vadd.f32 %v647, %v876
      %v878 = vpop.f32.mrb[0].mxu0
      %v879 = vadd.f32 %v643, %v878
      %v880 = vpop.f32.mrb[0].mxu0
      %v881 = vadd.f32 %v647, %v880
      %882 = vmatprep.mubr.bf16.mxu0 %v591
      %883 = vmatmul.mubr.bf16.gmra.mrb[0].mxu0 %v590
      %v884 = vpop.f32.mrb[0].mxu0
      %v885 = vadd.f32 %v643, %v884
      %v886 = vpop.f32.mrb[0].mxu0
      %v887 = vadd.f32 %v647, %v886
      %v888 = vpop.f32.mrb[0].mxu0
      %v889 = vadd.f32 %v643, %v888
      %v890 = vpop.f32.mrb[0].mxu0
      %v891 = vadd.f32 %v647, %v890
      %892 = vmatprep.mubr.bf16.mxu0 %v593
      %893 = vmatmul.mubr.bf16.gmra.mrb[0].mxu0 %v592
      %v894 = vpop.f32.mrb[0].mxu0
      %v895 = vadd.f32 %v643, %v894
      %v896 = vpop.f32.mrb[0].mxu0
      %v897 = vadd.f32 %v647, %v896
      %v898 = vpop.f32.mrb[0].mxu0
      %v899 = vadd.f32 %v643, %v898
      %v900 = vpop.f32.mrb[0].mxu0
      %v901 = vadd.f32 %v647, %v900
      %902 = vmatprep.mubr.bf16.mxu0 %v595
      %903 = vmatmul.mubr.bf16.gmra.mrb[0].mxu0 %v594
      %v904 = vpop.f32.mrb[0].mxu0
      %v905 = vadd.f32 %v643, %v904
      %v906 = vpop.f32.mrb[0].mxu0
      %v907 = vadd.f32 %v647, %v906
      %v908 = vpop.f32.mrb[0].mxu0
      %v909 = vadd.f32 %v643, %v908
      %v910 = vpop.f32.mrb[0].mxu0
      %v911 = vadd.f32 %v647, %v910
      %912 = vmatprep.mubr.bf16.mxu0 %v597
      %913 = vmatmul.mubr.bf16.gmra.mrb[0].mxu0 %v596
      %v914 = vpop.f32.mrb[0].mxu0
      %v915 = vadd.f32 %v643, %v914
      %v916 = vpop.f32.mrb[0].mxu0
      %v917 = vadd.f32 %v647, %v916
      %v918 = vpop.f32.mrb[0].mxu0
      %v919 = vadd.f32 %v643, %v918
      %v920 = vpop.f32.mrb[0].mxu0
      %v921 = vadd.f32 %v647, %v920
      %922 = vmatprep.mubr.bf16.mxu0 %v599
      %923 = vmatmul.mubr.bf16.gmra.mrb[0].mxu0 %v598
      %v924 = vpop.f32.mrb[0].mxu0
      %v925 = vadd.f32 %v643, %v924
      %v926 = vpop.f32.mrb[0].mxu0
      %v927 = vadd.f32 %v647, %v926
      %v928 = vpop.f32.mrb[0].mxu0
      %v929 = vadd.f32 %v643, %v928
      %v930 = vpop.f32.mrb[0].mxu0
      %v931 = vadd.f32 %v647, %v930
      %932 = vmatprep.mubr.bf16.mxu0 %v601
      %933 = vmatmul.mubr.bf16.gmra.mrb[0].mxu0 %v600
      %v934 = vpop.f32.mrb[0].mxu0
      %v935 = vadd.f32 %v643, %v934
      %v936 = vpop.f32.mrb[0].mxu0
      %v937 = vadd.f32 %v647, %v936
      %v938 = vpop.f32.mrb[0].mxu0
      %v939 = vadd.f32 %v643, %v938
      %v940 = vpop.f32.mrb[0].mxu0
      %v941 = vadd.f32 %v647, %v940
      %942 = vmatprep.mubr.bf16.mxu0 %v603
      %943 = vmatmul.mubr.bf16.gmra.mrb[0].mxu0 %v602
      %v944 = vpop.f32.mrb[0].mxu0
      %v945 = vadd.f32 %v643, %v944
      %v946 = vpop.f32.mrb[0].mxu0
      %v947 = vadd.f32 %v647, %v946
      %v948 = vpop.f32.mrb[0].mxu0
      %v949 = vadd.f32 %v643, %v948
      %v950 = vpop.f32.mrb[0].mxu0
      %v951 = vadd.f32 %v647, %v950
      %952 = vmatprep.mubr.bf16.mxu0 %v605
      %953 = vmatmul.mubr.bf16.gmra.mrb[0].mxu0 %v604
      %v954 = vpop.f32.mrb[0].mxu0
      %v955 = vadd.f32 %v643, %v954
      %v956 = vpop.f32.mrb[0].mxu0
      %v957 = vadd.f32 %v647, %v956
      %v958 = vpop.f32.mrb[0].mxu0
      %v959 = vadd.f32 %v643, %v958
      %v960 = vpop.f32.mrb[0].mxu0
      %v961 = vadd.f32 %v647, %v960
      %962 = vdwg.mxu0
      %v963 = vmax.f32 %v845, 0.0
      %v964 = vmax.f32 %v847, 0.0
      %v965 = vmax.f32 %v849, 0.0
      %v966 = vmax.f32 %v851, 0.0
      %v967 = vmax.f32 %v855, 0.0
      %v968 = vmax.f32 %v857, 0.0
      %v969 = vmax.f32 %v859, 0.0
      %v970 = vmax.f32 %v861, 0.0
      %v971 = vmax.f32 %v865, 0.0
      %v972 = vmax.f32 %v867, 0.0
      %v973 = vmax.f32 %v869, 0.0
      %v974 = vmax.f32 %v871, 0.0
      %v975 = vmax.f32 %v875, 0.0
      %v976 = vmax.f32 %v877, 0.0
      %v977 = vmax.f32 %v879, 0.0
      %v978 = vmax.f32 %v881, 0.0
      %v979 = vmax.f32 %v885, 0.0
      %v980 = vmax.f32 %v887, 0.0
      %v981 = vmax.f32 %v889, 0.0
      %v982 = vmax.f32 %v891, 0.0
      %v983 = vmax.f32 %v895, 0.0
      %v984 = vmax.f32 %v897, 0.0
      %v985 = vmax.f32 %v899, 0.0
      %v986 = vmax.f32 %v901, 0.0
      %v987 = vmax.f32 %v905, 0.0
      %v988 = vmax.f32 %v907, 0.0
      %v989 = vmax.f32 %v909, 0.0
      %v990 = vmax.f32 %v911, 0.0
      %v991 = vmax.f32 %v915, 0.0
      %v992 = vmax.f32 %v917, 0.0
      %v993 = vmax.f32 %v919, 0.0
      %v994 = vmax.f32 %v921, 0.0
      %v995 = vmax.f32 %v925, 0.0
      %v996 = vmax.f32 %v927, 0.0
      %v997 = vmax.f32 %v929, 0.0
      %v998 = vmax.f32 %v931, 0.0
      %v999 = vmax.f32 %v935, 0.0
      %v1000 = vmax.f32 %v937, 0.0
      %v1001 = vmax.f32 %v939, 0.0
      %v1002 = vmax.f32 %v941, 0.0
      %v1003 = vmax.f32 %v945, 0.0
      %v1004 = vmax.f32 %v947, 0.0
      %v1005 = vmax.f32 %v949, 0.0
      %v1006 = vmax.f32 %v951, 0.0
      %v1007 = vmax.f32 %v955, 0.0
      %v1008 = vmax.f32 %v957, 0.0
      %v1009 = vmax.f32 %v959, 0.0
      %v1010 = vmax.f32 %v961, 0.0
      %v1011 = vld [vmem:[%s5] sm:$0x3]
      %v1013 = vlaneseq
      %v1014 = vshrl.u32 %v1013, 7
      %v1015 = vsub.s32 0, %v1014
      %v1016 = vrot.slane %v1011, %v1015
      %v1017 = vlaneseq
      %v1018 = vshrl.u32 %v1017, 7
      %v1019 = vsub.s32 1, %v1018
      %v1020 = vrot.slane %v1011, %v1019
      %v1023 = vmul.f32 %v963, %v1016
      %v1024 = vmul.f32 %v964, %v1020
      %v1025 = vmul.f32 %v965, %v1016
      %v1026 = vmul.f32 %v966, %v1020
      %v1027 = vmul.f32 %v967, %v1016
      %v1028 = vmul.f32 %v968, %v1020
      %v1029 = vmul.f32 %v969, %v1016
      %v1030 = vmul.f32 %v970, %v1020
      %v1031 = vmul.f32 %v971, %v1016
      %v1032 = vmul.f32 %v972, %v1020
      %v1033 = vmul.f32 %v973, %v1016
      %v1034 = vmul.f32 %v974, %v1020
      %v1035 = vmul.f32 %v975, %v1016
      %v1036 = vmul.f32 %v976, %v1020
      %v1037 = vmul.f32 %v977, %v1016
      %v1038 = vmul.f32 %v978, %v1020
      %v1039 = vmul.f32 %v979, %v1016
      %v1040 = vmul.f32 %v980, %v1020
      %v1041 = vmul.f32 %v981, %v1016
      %v1042 = vmul.f32 %v982, %v1020
      %v1043 = vmul.f32 %v983, %v1016
      %v1044 = vmul.f32 %v984, %v1020
      %v1045 = vmul.f32 %v985, %v1016
      %v1046 = vmul.f32 %v986, %v1020
      %v1047 = vmul.f32 %v987, %v1016
      %v1048 = vmul.f32 %v988, %v1020
      %v1049 = vmul.f32 %v989, %v1016
      %v1050 = vmul.f32 %v990, %v1020
      %v1051 = vmul.f32 %v991, %v1016
      %v1052 = vmul.f32 %v992, %v1020
      %v1053 = vmul.f32 %v993, %v1016
      %v1054 = vmul.f32 %v994, %v1020
      %v1055 = vmul.f32 %v995, %v1016
      %v1056 = vmul.f32 %v996, %v1020
      %v1057 = vmul.f32 %v997, %v1016
      %v1058 = vmul.f32 %v998, %v1020
      %v1059 = vmul.f32 %v999, %v1016
      %v1060 = vmul.f32 %v1000, %v1020
      %v1061 = vmul.f32 %v1001, %v1016
      %v1062 = vmul.f32 %v1002, %v1020
      %v1063 = vmul.f32 %v1003, %v1016
      %v1064 = vmul.f32 %v1004, %v1020
      %v1065 = vmul.f32 %v1005, %v1016
      %v1066 = vmul.f32 %v1006, %v1020
      %v1067 = vmul.f32 %v1007, %v1016
      %v1068 = vmul.f32 %v1008, %v1020
      %v1069 = vmul.f32 %v1009, %v1016
      %v1070 = vmul.f32 %v1010, %v1020
      %v1071 = vadd.f32 %v1023, %v1024
      %1072 = vadd.xlane.f32.xlu0 %v1071
      %v1073 = vpop.xlane.xlu0 %1072
      %v1074 = vadd.f32 %v1025, %v1026
      %1075 = vadd.xlane.f32.xlu0 %v1074
      %v1076 = vpop.xlane.xlu0 %1075
      %v1077 = vadd.f32 %v1027, %v1028
      %1078 = vadd.xlane.f32.xlu0 %v1077
      %v1079 = vpop.xlane.xlu0 %1078
      %v1080 = vadd.f32 %v1029, %v1030
      %1081 = vadd.xlane.f32.xlu0 %v1080
      %v1082 = vpop.xlane.xlu0 %1081
      %v1083 = vadd.f32 %v1031, %v1032
      %1084 = vadd.xlane.f32.xlu0 %v1083
      %v1085 = vpop.xlane.xlu0 %1084
      %v1086 = vadd.f32 %v1033, %v1034
      %1087 = vadd.xlane.f32.xlu0 %v1086
      %v1088 = vpop.xlane.xlu0 %1087
      %v1089 = vadd.f32 %v1035, %v1036
      %1090 = vadd.xlane.f32.xlu0 %v1089
      %v1091 = vpop.xlane.xlu0 %1090
      %v1092 = vadd.f32 %v1037, %v1038
      %1093 = vadd.xlane.f32.xlu0 %v1092
      %v1094 = vpop.xlane.xlu0 %1093
      %v1095 = vadd.f32 %v1039, %v1040
      %1096 = vadd.xlane.f32.xlu0 %v1095
      %v1097 = vpop.xlane.xlu0 %1096
      %v1098 = vadd.f32 %v1041, %v1042
      %1099 = vadd.xlane.f32.xlu0 %v1098
      %v1100 = vpop.xlane.xlu0 %1099
      %v1101 = vadd.f32 %v1043, %v1044
      %1102 = vadd.xlane.f32.xlu0 %v1101
      %v1103 = vpop.xlane.xlu0 %1102
      %v1104 = vadd.f32 %v1045, %v1046
      %1105 = vadd.xlane.f32.xlu0 %v1104
      %v1106 = vpop.xlane.xlu0 %1105
      %v1107 = vadd.f32 %v1047, %v1048
      %1108 = vadd.xlane.f32.xlu0 %v1107
      %v1109 = vpop.xlane.xlu0 %1108
      %v1110 = vadd.f32 %v1049, %v1050
      %1111 = vadd.xlane.f32.xlu0 %v1110
      %v1112 = vpop.xlane.xlu0 %1111
      %v1113 = vadd.f32 %v1051, %v1052
      %1114 = vadd.xlane.f32.xlu0 %v1113
      %v1115 = vpop.xlane.xlu0 %1114
      %v1116 = vadd.f32 %v1053, %v1054
      %1117 = vadd.xlane.f32.xlu0 %v1116
      %v1118 = vpop.xlane.xlu0 %1117
      %v1119 = vadd.f32 %v1055, %v1056
      %1120 = vadd.xlane.f32.xlu0 %v1119
      %v1121 = vpop.xlane.xlu0 %1120
      %v1122 = vadd.f32 %v1057, %v1058
      %1123 = vadd.xlane.f32.xlu0 %v1122
      %v1124 = vpop.xlane.xlu0 %1123
      %v1125 = vadd.f32 %v1059, %v1060
      %1126 = vadd.xlane.f32.xlu0 %v1125
      %v1127 = vpop.xlane.xlu0 %1126
      %v1128 = vadd.f32 %v1061, %v1062
      %1129 = vadd.xlane.f32.xlu0 %v1128
      %v1130 = vpop.xlane.xlu0 %1129
      %v1131 = vadd.f32 %v1063, %v1064
      %1132 = vadd.xlane.f32.xlu0 %v1131
      %v1133 = vpop.xlane.xlu0 %1132
      %v1134 = vadd.f32 %v1065, %v1066
      %1135 = vadd.xlane.f32.xlu0 %v1134
      %v1136 = vpop.xlane.xlu0 %1135
      %v1137 = vadd.f32 %v1067, %v1068
      %1138 = vadd.xlane.f32.xlu0 %v1137
      %v1139 = vpop.xlane.xlu0 %1138
      %v1140 = vadd.f32 %v1069, %v1070
      %1141 = vadd.xlane.f32.xlu0 %v1140
      %v1142 = vpop.xlane.xlu0 %1141
      %s1143 = sld [smem:[#allocation2]]
      %v1144 = vstv %s1143
      %v1145 = vadd.f32 %v1073, %v1144
      %v1146 = vadd.f32 %v1076, %v1144
      %v1147 = vadd.f32 %v1079, %v1144
      %v1148 = vadd.f32 %v1082, %v1144
      %v1149 = vadd.f32 %v1085, %v1144
      %v1150 = vadd.f32 %v1088, %v1144
      %v1151 = vadd.f32 %v1091, %v1144
      %v1152 = vadd.f32 %v1094, %v1144
      %v1153 = vadd.f32 %v1097, %v1144
      %v1154 = vadd.f32 %v1100, %v1144
      %v1155 = vadd.f32 %v1103, %v1144
      %v1156 = vadd.f32 %v1106, %v1144
      %v1157 = vadd.f32 %v1109, %v1144
      %v1158 = vadd.f32 %v1112, %v1144
      %v1159 = vadd.f32 %v1115, %v1144
      %v1160 = vadd.f32 %v1118, %v1144
      %v1161 = vadd.f32 %v1121, %v1144
      %v1162 = vadd.f32 %v1124, %v1144
      %v1163 = vadd.f32 %v1127, %v1144
      %v1164 = vadd.f32 %v1130, %v1144
      %v1165 = vadd.f32 %v1133, %v1144
      %v1166 = vadd.f32 %v1136, %v1144
      %v1167 = vadd.f32 %v1139, %v1144
      %v1168 = vadd.f32 %v1142, %v1144
      %vm1169 = vcmask 7168
      %1170 = vst.msk [vmem:[%s281] sm:$0xff] %vm1169, %v1145
      %1171 = vst.msk [vmem:[%s281 + $0x8] sm:$0xff] %vm1169, %v1146
      %1172 = vst.msk [vmem:[%s281 + $0x10] sm:$0xff] %vm1169, %v1147
      %1173 = vst.msk [vmem:[%s281 + $0x18] sm:$0xff] %vm1169, %v1148
      %1174 = vst.msk [vmem:[%s281 + $0x20] sm:$0xff] %vm1169, %v1149
      %1175 = vst.msk [vmem:[%s281 + $0x28] sm:$0xff] %vm1169, %v1150
      %1176 = vst.msk [vmem:[%s281 + $0x30] sm:$0xff] %vm1169, %v1151
      %1177 = vst.msk [vmem:[%s281 + $0x38] sm:$0xff] %vm1169, %v1152
      %1178 = vst.msk [vmem:[%s281 + $0x40] sm:$0xff] %vm1169, %v1153
      %1179 = vst.msk [vmem:[%s281 + $0x48] sm:$0xff] %vm1169, %v1154
      %1180 = vst.msk [vmem:[%s281 + $0x50] sm:$0xff] %vm1169, %v1155
      %1181 = vst.msk [vmem:[%s281 + $0x58] sm:$0xff] %vm1169, %v1156
      %1182 = vst.msk [vmem:[%s281 + $0x60] sm:$0xff] %vm1169, %v1157
      %1183 = vst.msk [vmem:[%s281 + $0x68] sm:$0xff] %vm1169, %v1158
      %1184 = vst.msk [vmem:[%s281 + $0x70] sm:$0xff] %vm1169, %v1159
      %1185 = vst.msk [vmem:[%s281 + $0x78] sm:$0xff] %vm1169, %v1160
      %1186 = vst.msk [vmem:[%s281 + $0x80] sm:$0xff] %vm1169, %v1161
      %1187 = vst.msk [vmem:[%s281 + $0x88] sm:$0xff] %vm1169, %v1162
      %1188 = vst.msk [vmem:[%s281 + $0x90] sm:$0xff] %vm1169, %v1163
      %1189 = vst.msk [vmem:[%s281 + $0x98] sm:$0xff] %vm1169, %v1164
      %1190 = vst.msk [vmem:[%s281 + $0xa0] sm:$0xff] %vm1169, %v1165
      %1191 = vst.msk [vmem:[%s281 + $0xa8] sm:$0xff] %vm1169, %v1166
      %1192 = vst.msk [vmem:[%s281 + $0xb0] sm:$0xff] %vm1169, %v1167
      %1193 = vst.msk [vmem:[%s281 + $0xb8] sm:$0xff] %vm1169, %v1168
      %s1194 = smul.u32 24, %s19
      %p1195 = scmp.lt.s32.totalorder %s1194, 47
      %s1196 = scalar_select %p1195, %s1194, 47
      %s1197 = smul.addr %s1196, 8
      %s1198 = scalar_lea.vmem %s7, %s1197
      // Predicated region
      $region49: #{tpu_custom_call.1} parent=47 // pred_check
        %p1199 = pneg %p189
      $region50: #{tpu_custom_call.1} parent=47 // pred_check_branch
        %1201 = sbr.rel (%p1199) target = $region52
      $region51: #{tpu_custom_call.1} parent=47 // pred_region
        %s1202 = smul.u32 24, %s19
      $region52: #{tpu_custom_call.1} parent=47 // pred_fallthru
        _
    $region48: #{tpu_custom_call.1} parent=5 // pred_fallthru
      _
    %p1203 = scmp.le.s32.totalorder 2, %s14
    // Predicated region
    $region53: #{tpu_custom_call.1} parent=5 // pred_check
      %p1204 = pneg %p1203
    $region54: #{tpu_custom_call.1} parent=5 // pred_check_branch
      %1206 = sbr.rel (%p1204) target = $region56
    $region55: #{tpu_custom_call.1} parent=5 // pred_region
      %s1207 = ssub.s32 %s14, 2
      // Predicated region
      $region57: #{tpu_custom_call.1} parent=55 // pred_check
        %p1208 = pneg %p195
      $region58: #{tpu_custom_call.1} parent=55 // pred_check_branch
        %1210 = sbr.rel (%p1208) target = $region60
      $region59: #{tpu_custom_call.1} parent=55 // pred_region
        %s1211 = smul.u32 24, %s20
        %p1212 = scmp.lt.s32.totalorder %s1211, 47
        %s1213 = scalar_select %p1212, %s1211, 47
        %s1214 = smul.addr %s1213, 8
        %s1215 = scalar_lea.vmem %s7, %s1214
      $region60: #{tpu_custom_call.1} parent=55 // pred_fallthru
        _
    $region56: #{tpu_custom_call.1} parent=5 // pred_fallthru
      _
  $region6: #{tpu_custom_call.1} parent=0 // loop_footer
    %s18 = sadd.s32 1, %s14
  $region7: #{tpu_custom_call.1} parent=0 // loop_footer_branch
    %13 = sbr.rel target = $region3
  $region8: #{tpu_custom_call.1} parent=0 // loop_exit
    _

</llo_original>
